<compile_context>
chip_gen: v7x
topology: tpu7x:2x2x1
jax: 0.10.0
libtpu: 0.0.40
codegen_flags: <defaults>
</compile_context>

<pallas_src>
import jax
import jax.numpy as jnp
from jax import lax
from jax.experimental import pallas as pl
from jax.experimental.pallas import tpu as pltpu

_BN_EPS = 1e-5
_LANE = 128
_VMEM_SPEC = pl.BlockSpec(memory_space=pltpu.MemorySpace.VMEM)


# ---------------------------------------------------------------------------
# Fused kernel
# ---------------------------------------------------------------------------
def _make_fused_kernel(num_layers, batch, eps, use_bf16):
    """Kernel: x (BC, Din) -> [Linear -> BN -> ReLU]^(L-1) -> Linear (lane-padded)."""
    num_bn = num_layers - 1

    def mm(a, b):
        # Single 2-D MXU matmul; optional bf16 inputs, f32 accumulation.
        if use_bf16:
            a = a.astype(jnp.bfloat16)
            b = b.astype(jnp.bfloat16)
        return lax.dot_general(
            a, b,
            dimension_numbers=(((1,), (0,)), ((), ())),
            preferred_element_type=jnp.float32,
        )

    def mm_f32(a, b):
        # Stats scatter dots stay in f32 regardless of the bf16 flag.
        return lax.dot_general(
            a, b,
            dimension_numbers=(((1,), (0,)), ((), ())),
            preferred_element_type=jnp.float32,
        )

    def kernel(*refs):
        idx = 0
        x_ref = refs[idx]; idx += 1
        w_refs = refs[idx:idx + num_layers]; idx += num_layers
        b_refs = refs[idx:idx + num_layers]; idx += num_layers
        if num_bn > 0:
            p_ref = refs[idx]; idx += 1        # (BC, BC) same-channel one-hot
            g_ref = refs[idx]; idx += 1        # (num_bn, BC, 1) per-row gamma
            be_ref = refs[idx]; idx += 1       # (num_bn, BC, 1) per-row beta
        o_ref = refs[idx]

        h = x_ref[...].astype(jnp.float32)     # (BC, Din) -- lives in vregs

        if num_bn > 0:
            p = p_ref[...]                     # constant aggregation matrix

        # Hidden layers: Linear -> BatchNorm1d(C) (batch stats) -> ReLU.
        for i in range(num_bn):
            w = w_refs[i][...]                              # (Din_i, H)
            y = mm(h, w) + b_refs[i][...]                   # (BC, H), bias (1, H)

            # One-pass per-channel stats.  Lane reduces go to the XLU; the
            # channel aggregation / broadcast-back is two tiny MXU dots.
            t1 = jnp.sum(y, axis=1, keepdims=True)          # (BC, 1)
            t2 = jnp.sum(y * y, axis=1, keepdims=True)      # (BC, 1)
            inv_n = 1.0 / float(batch * y.shape[1])         # N = batch * length
            mean_r = mm_f32(p, t1) * inv_n                  # (BC, 1) per-row mean
            msq_r = mm_f32(p, t2) * inv_n                   # (BC, 1) per-row E[y^2]
            var_r = jnp.maximum(msq_r - mean_r * mean_r, 0.0)

            scale_r = lax.rsqrt(var_r + eps) * g_ref[i]     # (BC, 1)
            shift_r = be_ref[i] - mean_r * scale_r          # (BC, 1)
            h = jnp.maximum(y * scale_r + shift_r, 0.0)     # lane-broadcast

        # Final linear, output already lane-padded to a multiple of 128.
        y = mm(h, w_refs[num_layers - 1][...]) + b_refs[num_layers - 1][...]
        o_ref[...] = y.astype(o_ref.dtype)

    return kernel


# ---------------------------------------------------------------------------
# Wrapper around pallas_call
# ---------------------------------------------------------------------------
def mlp_forward(x, weights, biases, gammas, betas, *, use_bf16=False):
    """x: (B, C, Din); weights[i]: (fan_out, fan_in) torch layout; biases[i]: (fan_out,)."""
    B, C, d_in = x.shape
    bc = B * C
    num_layers = len(weights)
    num_bn = num_layers - 1
    out_dim = weights[-1].shape[0]
    out_pad = max(_LANE, -(-out_dim // _LANE) * _LANE)      # lane-dense output width

    x2 = x.reshape(bc, d_in)                                # free XLA reshape

    # Pre-transpose weights to (Din, H); biases to (1, H).  Pad the final
    # layer with zero output columns so the only HBM store is lane-dense.
    wts = [jnp.transpose(w) for w in weights[:-1]]
    bts = [b.reshape(1, -1) for b in biases[:-1]]
    w_last = jnp.pad(jnp.transpose(weights[-1]), ((0, 0), (0, out_pad - out_dim)))
    b_last = jnp.pad(biases[-1], (0, out_pad - out_dim)).reshape(1, -1)
    wts.append(w_last)
    bts.append(b_last)

    inputs = [x2] + wts + bts
    if num_bn > 0:
        # P[r, r'] = 1 if rows r, r' belong to the same channel (r % C).
        chan = jnp.arange(bc, dtype=jnp.int32) % C
        p = (chan[:, None] == chan[None, :]).astype(jnp.float32)          # (bc, bc)
        # Per-row broadcast of per-channel affine params, stacked per layer.
        g_all = jnp.stack([jnp.tile(g, B).reshape(bc, 1) for g in gammas])   # (num_bn, bc, 1)
        be_all = jnp.stack([jnp.tile(b, B).reshape(bc, 1) for b in betas])   # (num_bn, bc, 1)
        inputs += [p, g_all, be_all]

    kernel = _make_fused_kernel(num_layers, B, _BN_EPS, use_bf16)

    flops = sum(2 * bc * w.shape[0] * w.shape[1] for w in wts) + num_bn * 4 * bc * bc
    n_bytes = 4 * (sum(int(a.size) for a in inputs) + bc * out_pad)
    cost = pl.CostEstimate(
        flops=int(flops),
        transcendentals=int(num_bn * bc),
        bytes_accessed=int(n_bytes),
    )

    out2d = pl.pallas_call(
        kernel,
        out_shape=jax.ShapeDtypeStruct((bc, out_pad), jnp.float32),
        in_specs=[_VMEM_SPEC] * len(inputs),
        out_specs=_VMEM_SPEC,
        cost_estimate=cost,
    )(*inputs)

    return out2d[:, :out_dim].reshape(B, C, out_dim)


# ---------------------------------------------------------------------------
# MLP module (parameter container + forward)
# ---------------------------------------------------------------------------
class MLPPallas:
    def __init__(self, num_layers, input_dim, hidden_dim, output_dim, key,
                 use_bf16=False):
        if num_layers < 1:
            raise ValueError("number of layers should be positive!")
        self.num_layers = num_layers
        self.linear_or_not = num_layers == 1
        self.use_bf16 = use_bf16   # bf16 matmul inputs change results at ~1e-2 rel tol

        def init_linear(key, fan_in, fan_out):
            # matches torch.nn.Linear default init: U(-1/sqrt(fan_in), +1/sqrt(fan_in))
            kw, kb = jax.random.split(key)
            bound = 1.0 / (fan_in ** 0.5)
            w = jax.random.uniform(kw, (fan_out, fan_in), jnp.float32, -bound, bound)
            b = jax.random.uniform(kb, (fan_out,), jnp.float32, -bound, bound)
            return w, b

        self.weights, self.biases = [], []
        self.gammas, self.betas = [], []

        if self.linear_or_not:
            key, sub = jax.random.split(key)
            w, b = init_linear(sub, input_dim, output_dim)
            self.weights.append(w)
            self.biases.append(b)
        else:
            dims = [input_dim] + [hidden_dim] * (num_layers - 1) + [output_dim]
            for i in range(num_layers):
                key, sub = jax.random.split(key)
                w, b = init_linear(sub, dims[i], dims[i + 1])
                self.weights.append(w)
                self.biases.append(b)
            for _ in range(num_layers - 1):
                # BatchNorm1d(9) affine params: weight=1, bias=0 (torch default)
                self.gammas.append(jnp.ones((9,), jnp.float32))
                self.betas.append(jnp.zeros((9,), jnp.float32))

    def __call__(self, x):
        return mlp_forward(x, self.weights, self.biases, self.gammas, self.betas,
                           use_bf16=self.use_bf16)


# ---------------------------------------------------------------------------
# Plain-JAX reference (for a sanity check)
# ---------------------------------------------------------------------------
def _reference_forward(mlp, x):
    if mlp.linear_or_not:
        return jnp.einsum("bcd,hd->bch", x, mlp.weights[0]) + mlp.biases[0]
    h = x
    for layer in range(mlp.num_layers - 1):
        y = jnp.einsum("bcd,hd->bch", h, mlp.weights[layer]) + mlp.biases[layer]
        mean = jnp.mean(y, axis=(0, 2), keepdims=True)
        var = jnp.mean((y - mean) ** 2, axis=(0, 2), keepdims=True)
        y = (y - mean) / jnp.sqrt(var + _BN_EPS)
        y = mlp.gammas[layer][None, :, None] * y + mlp.betas[layer][None, :, None]
        h = jnp.maximum(y, 0.0)
    return jnp.einsum("bcd,hd->bch", h, mlp.weights[-1]) + mlp.biases[-1]


# ---------------------------------------------------------------------------
if __name__ == "__main__":
    key = jax.random.PRNGKey(0)
    k_x, k_p, k_p1 = jax.random.split(key, 3)

    B, C, INPUT_DIM, HIDDEN_DIM, OUTPUT_DIM = 2, 9, 16, 32, 8
    NUM_LAYERS = 3

    x = jax.random.normal(k_x, (B, C, INPUT_DIM), jnp.float32)

    # Multi-layer (Linear + BN + ReLU) path.
    mlp = MLPPallas(NUM_LAYERS, INPUT_DIM, HIDDEN_DIM, OUTPUT_DIM, k_p)
    out = jax.block_until_ready(mlp(x))
    ref = jax.block_until_ready(_reference_forward(mlp, x))
    assert out.shape == (B, C, OUTPUT_DIM), out.shape
    assert jnp.allclose(out, ref, atol=1e-4, rtol=1e-4), "mismatch vs reference (MLP)"

    # Single-layer (pure linear) path.
    mlp1 = MLPPallas(1, INPUT_DIM, HIDDEN_DIM, OUTPUT_DIM, k_p1)
    out1 = jax.block_until_ready(mlp1(x))
    ref1 = jax.block_until_ready(_reference_forward(mlp1, x))
    assert out1.shape == (B, C, OUTPUT_DIM), out1.shape
    assert jnp.allclose(out1, ref1, atol=1e-4, rtol=1e-4), "mismatch vs reference (linear)"

    print("KERNEL_OK")
</pallas_src>

<mosaic_0001>
module attributes {stable_mosaic.version = 11 : i64} {
  func.func @kernel(%arg0: memref<18x16xf32, #tpu.memory_space<vmem>>, %arg1: memref<16x32xf32, #tpu.memory_space<vmem>>, %arg2: memref<32x32xf32, #tpu.memory_space<vmem>>, %arg3: memref<32x128xf32, #tpu.memory_space<vmem>>, %arg4: memref<1x32xf32, #tpu.memory_space<vmem>>, %arg5: memref<1x32xf32, #tpu.memory_space<vmem>>, %arg6: memref<1x128xf32, #tpu.memory_space<vmem>>, %arg7: memref<18x18xf32, #tpu.memory_space<vmem>>, %arg8: memref<2x18x1xf32, #tpu.memory_space<vmem>>, %arg9: memref<2x18x1xf32, #tpu.memory_space<vmem>>, %arg10: memref<18x128xf32, #tpu.memory_space<vmem>>) attributes {dimension_semantics = [], scalar_prefetch = 0 : i64, scratch_operands = 0 : i64, tpu.core_type = #tpu.core_type<tc>} {
    %c0 = arith.constant 0 : index
    %c0_0 = arith.constant 0 : index
    %0 = vector.load %arg0[%c0, %c0_0] : memref<18x16xf32, #tpu.memory_space<vmem>>, vector<18x16xf32>
    %c0_1 = arith.constant 0 : index
    %c0_2 = arith.constant 0 : index
    %1 = vector.load %arg7[%c0_1, %c0_2] : memref<18x18xf32, #tpu.memory_space<vmem>>, vector<18x18xf32>
    %c0_3 = arith.constant 0 : index
    %c0_4 = arith.constant 0 : index
    %2 = vector.load %arg1[%c0_3, %c0_4] : memref<16x32xf32, #tpu.memory_space<vmem>>, vector<16x32xf32>
    %cst = arith.constant dense<0.000000e+00> : vector<18x32xf32>
    %3 = tpu.matmul %0, %2, %cst {dimension_numbers = #tpu.dot_dimension_numbers<[1], [0], [0], [1], [0, 0, 1, 1], [], []>} : vector<18x16xf32>, vector<16x32xf32>, vector<18x32xf32> -> vector<18x32xf32>
    %c0_5 = arith.constant 0 : index
    %c0_6 = arith.constant 0 : index
    %4 = vector.load %arg4[%c0_5, %c0_6] : memref<1x32xf32, #tpu.memory_space<vmem>>, vector<1x32xf32>
    %5 = vector.broadcast %4 : vector<1x32xf32> to vector<18x32xf32>
    %6 = arith.addf %3, %5 : vector<18x32xf32>
    %cst_7 = arith.constant dense<0.000000e+00> : vector<18xf32>
    %7 = vector.multi_reduction <add>, %6, %cst_7 [1] : vector<18x32xf32> to vector<18xf32>
    %8 = vector.shape_cast %7 : vector<18xf32> to vector<18x1xf32>
    %9 = arith.mulf %6, %6 : vector<18x32xf32>
    %cst_8 = arith.constant dense<0.000000e+00> : vector<18xf32>
    %10 = vector.multi_reduction <add>, %9, %cst_8 [1] : vector<18x32xf32> to vector<18xf32>
    %11 = vector.shape_cast %10 : vector<18xf32> to vector<18x1xf32>
    %cst_9 = arith.constant dense<0.000000e+00> : vector<18x1xf32>
    %12 = tpu.matmul %1, %8, %cst_9 {dimension_numbers = #tpu.dot_dimension_numbers<[1], [0], [0], [1], [0, 0, 1, 1], [], []>} : vector<18x18xf32>, vector<18x1xf32>, vector<18x1xf32> -> vector<18x1xf32>
    %cst_10 = arith.constant 1.562500e-02 : f32
    %13 = vector.broadcast %cst_10 : f32 to vector<18x1xf32>
    %14 = arith.mulf %12, %13 : vector<18x1xf32>
    %cst_11 = arith.constant dense<0.000000e+00> : vector<18x1xf32>
    %15 = tpu.matmul %1, %11, %cst_11 {dimension_numbers = #tpu.dot_dimension_numbers<[1], [0], [0], [1], [0, 0, 1, 1], [], []>} : vector<18x18xf32>, vector<18x1xf32>, vector<18x1xf32> -> vector<18x1xf32>
    %cst_12 = arith.constant 1.562500e-02 : f32
    %16 = vector.broadcast %cst_12 : f32 to vector<18x1xf32>
    %17 = arith.mulf %15, %16 : vector<18x1xf32>
    %18 = arith.mulf %14, %14 : vector<18x1xf32>
    %19 = arith.subf %17, %18 : vector<18x1xf32>
    %cst_13 = arith.constant 0.000000e+00 : f32
    %20 = vector.broadcast %cst_13 : f32 to vector<18x1xf32>
    %21 = arith.maximumf %19, %20 : vector<18x1xf32>
    %cst_14 = arith.constant 9.99999974E-6 : f32
    %22 = vector.broadcast %cst_14 : f32 to vector<18x1xf32>
    %23 = arith.addf %21, %22 : vector<18x1xf32>
    %24 = math.rsqrt %23 : vector<18x1xf32>
    %c0_15 = arith.constant 0 : index
    %c0_16 = arith.constant 0 : index
    %c0_17 = arith.constant 0 : index
    %25 = vector.load %arg8[%c0_15, %c0_16, %c0_17] : memref<2x18x1xf32, #tpu.memory_space<vmem>>, vector<1x18x1xf32>
    %26 = vector.shape_cast %25 : vector<1x18x1xf32> to vector<18x1xf32>
    %27 = arith.mulf %24, %26 : vector<18x1xf32>
    %c0_18 = arith.constant 0 : index
    %c0_19 = arith.constant 0 : index
    %c0_20 = arith.constant 0 : index
    %28 = vector.load %arg9[%c0_18, %c0_19, %c0_20] : memref<2x18x1xf32, #tpu.memory_space<vmem>>, vector<1x18x1xf32>
    %29 = vector.shape_cast %28 : vector<1x18x1xf32> to vector<18x1xf32>
    %30 = arith.mulf %14, %27 : vector<18x1xf32>
    %31 = arith.subf %29, %30 : vector<18x1xf32>
    %32 = vector.broadcast %27 : vector<18x1xf32> to vector<18x32xf32>
    %33 = arith.mulf %6, %32 : vector<18x32xf32>
    %34 = vector.broadcast %31 : vector<18x1xf32> to vector<18x32xf32>
    %35 = arith.addf %33, %34 : vector<18x32xf32>
    %cst_21 = arith.constant 0.000000e+00 : f32
    %36 = vector.broadcast %cst_21 : f32 to vector<18x32xf32>
    %37 = arith.maximumf %35, %36 : vector<18x32xf32>
    %c0_22 = arith.constant 0 : index
    %c0_23 = arith.constant 0 : index
    %38 = vector.load %arg2[%c0_22, %c0_23] : memref<32x32xf32, #tpu.memory_space<vmem>>, vector<32x32xf32>
    %cst_24 = arith.constant dense<0.000000e+00> : vector<18x32xf32>
    %39 = tpu.matmul %37, %38, %cst_24 {dimension_numbers = #tpu.dot_dimension_numbers<[1], [0], [0], [1], [0, 0, 1, 1], [], []>} : vector<18x32xf32>, vector<32x32xf32>, vector<18x32xf32> -> vector<18x32xf32>
    %c0_25 = arith.constant 0 : index
    %c0_26 = arith.constant 0 : index
    %40 = vector.load %arg5[%c0_25, %c0_26] : memref<1x32xf32, #tpu.memory_space<vmem>>, vector<1x32xf32>
    %41 = vector.broadcast %40 : vector<1x32xf32> to vector<18x32xf32>
    %42 = arith.addf %39, %41 : vector<18x32xf32>
    %cst_27 = arith.constant dense<0.000000e+00> : vector<18xf32>
    %43 = vector.multi_reduction <add>, %42, %cst_27 [1] : vector<18x32xf32> to vector<18xf32>
    %44 = vector.shape_cast %43 : vector<18xf32> to vector<18x1xf32>
    %45 = arith.mulf %42, %42 : vector<18x32xf32>
    %cst_28 = arith.constant dense<0.000000e+00> : vector<18xf32>
    %46 = vector.multi_reduction <add>, %45, %cst_28 [1] : vector<18x32xf32> to vector<18xf32>
    %47 = vector.shape_cast %46 : vector<18xf32> to vector<18x1xf32>
    %cst_29 = arith.constant dense<0.000000e+00> : vector<18x1xf32>
    %48 = tpu.matmul %1, %44, %cst_29 {dimension_numbers = #tpu.dot_dimension_numbers<[1], [0], [0], [1], [0, 0, 1, 1], [], []>} : vector<18x18xf32>, vector<18x1xf32>, vector<18x1xf32> -> vector<18x1xf32>
    %cst_30 = arith.constant 1.562500e-02 : f32
    %49 = vector.broadcast %cst_30 : f32 to vector<18x1xf32>
    %50 = arith.mulf %48, %49 : vector<18x1xf32>
    %cst_31 = arith.constant dense<0.000000e+00> : vector<18x1xf32>
    %51 = tpu.matmul %1, %47, %cst_31 {dimension_numbers = #tpu.dot_dimension_numbers<[1], [0], [0], [1], [0, 0, 1, 1], [], []>} : vector<18x18xf32>, vector<18x1xf32>, vector<18x1xf32> -> vector<18x1xf32>
    %cst_32 = arith.constant 1.562500e-02 : f32
    %52 = vector.broadcast %cst_32 : f32 to vector<18x1xf32>
    %53 = arith.mulf %51, %52 : vector<18x1xf32>
    %54 = arith.mulf %50, %50 : vector<18x1xf32>
    %55 = arith.subf %53, %54 : vector<18x1xf32>
    %cst_33 = arith.constant 0.000000e+00 : f32
    %56 = vector.broadcast %cst_33 : f32 to vector<18x1xf32>
    %57 = arith.maximumf %55, %56 : vector<18x1xf32>
    %cst_34 = arith.constant 9.99999974E-6 : f32
    %58 = vector.broadcast %cst_34 : f32 to vector<18x1xf32>
    %59 = arith.addf %57, %58 : vector<18x1xf32>
    %60 = math.rsqrt %59 : vector<18x1xf32>
    %c1 = arith.constant 1 : index
    %c0_35 = arith.constant 0 : index
    %c0_36 = arith.constant 0 : index
    %61 = vector.load %arg8[%c1, %c0_35, %c0_36] : memref<2x18x1xf32, #tpu.memory_space<vmem>>, vector<1x18x1xf32>
    %62 = vector.shape_cast %61 : vector<1x18x1xf32> to vector<18x1xf32>
    %63 = arith.mulf %60, %62 : vector<18x1xf32>
    %c1_37 = arith.constant 1 : index
    %c0_38 = arith.constant 0 : index
    %c0_39 = arith.constant 0 : index
    %64 = vector.load %arg9[%c1_37, %c0_38, %c0_39] : memref<2x18x1xf32, #tpu.memory_space<vmem>>, vector<1x18x1xf32>
    %65 = vector.shape_cast %64 : vector<1x18x1xf32> to vector<18x1xf32>
    %66 = arith.mulf %50, %63 : vector<18x1xf32>
    %67 = arith.subf %65, %66 : vector<18x1xf32>
    %68 = vector.broadcast %63 : vector<18x1xf32> to vector<18x32xf32>
    %69 = arith.mulf %42, %68 : vector<18x32xf32>
    %70 = vector.broadcast %67 : vector<18x1xf32> to vector<18x32xf32>
    %71 = arith.addf %69, %70 : vector<18x32xf32>
    %cst_40 = arith.constant 0.000000e+00 : f32
    %72 = vector.broadcast %cst_40 : f32 to vector<18x32xf32>
    %73 = arith.maximumf %71, %72 : vector<18x32xf32>
    %c0_41 = arith.constant 0 : index
    %c0_42 = arith.constant 0 : index
    %74 = vector.load %arg3[%c0_41, %c0_42] : memref<32x128xf32, #tpu.memory_space<vmem>>, vector<32x128xf32>
    %cst_43 = arith.constant dense<0.000000e+00> : vector<18x128xf32>
    %75 = tpu.matmul %73, %74, %cst_43 {dimension_numbers = #tpu.dot_dimension_numbers<[1], [0], [0], [1], [0, 0, 1, 1], [], []>} : vector<18x32xf32>, vector<32x128xf32>, vector<18x128xf32> -> vector<18x128xf32>
    %c0_44 = arith.constant 0 : index
    %c0_45 = arith.constant 0 : index
    %76 = vector.load %arg6[%c0_44, %c0_45] : memref<1x128xf32, #tpu.memory_space<vmem>>, vector<1x128xf32>
    %77 = vector.broadcast %76 : vector<1x128xf32> to vector<18x128xf32>
    %78 = arith.addf %75, %77 : vector<18x128xf32>
    %c0_46 = arith.constant 0 : index
    %c0_47 = arith.constant 0 : index
    %79 = vector.load %arg10[%c0_46, %c0_47] : memref<18x128xf32, #tpu.memory_space<vmem>>, vector<18x128xf32>
    tpu.vector_store %arg10[%c0_46, %c0_47], %78 {strides = array<i32>} : memref<18x128xf32, #tpu.memory_space<vmem>>, vector<18x128xf32>,
    return
  }
}

</mosaic_0001>

<llo_original>
// kernel: tpu_custom_call.1
$region0: #{tpu_custom_call.1}
  #allocation0 [shape = 'u32[]', space=smem, size = 0x4, offset = 0x4, fixed_abs, tag = 'smem constant byte address 0x4 - core index']
  #allocation1 [shape = 'u32[144,128]{1,0:T(1,128)}', space=vmem, size = 0x12000, scoped, tag = 'internal scratch']
  %s0 = inlined_call_operand.vmem [shape: f32[18,16], index: 0, kind: input, shape index: {}]
  %s1 = inlined_call_operand.vmem [shape: f32[16,32], index: 1, kind: input, shape index: {}]
  %s2 = inlined_call_operand.vmem [shape: f32[32,32], index: 2, kind: input, shape index: {}]
  %s3 = inlined_call_operand.vmem [shape: f32[32,128], index: 3, kind: input, shape index: {}]
  %s4 = inlined_call_operand.vmem [shape: f32[1,32], index: 4, kind: input, shape index: {}]
  %s5 = inlined_call_operand.vmem [shape: f32[1,32], index: 5, kind: input, shape index: {}]
  %s6 = inlined_call_operand.vmem [shape: f32[1,128], index: 6, kind: input, shape index: {}]
  %s7 = inlined_call_operand.vmem [shape: f32[18,18], index: 7, kind: input, shape index: {}]
  %s8 = inlined_call_operand.vmem [shape: f32[2,18,1], index: 8, kind: input, shape index: {}]
  %s9 = inlined_call_operand.vmem [shape: f32[2,18,1], index: 9, kind: input, shape index: {}]
  %s10 = inlined_call_operand.hbm [shape: f32[18,128], index: 10, kind: output, shape index: {}]
  %s11 = sld [smem:[#allocation0]]
  $region50: #{tpu_custom_call.1} parent=0
    _
  %s13 = ssub.s32 1, %s11
  %s14 = scalar_select 0, %s13, %s11
  $region1: #{tpu_custom_call.1} parent=0
    #allocation2 [shape = 'u8[12288]{0}', space=vmem, size = 0x3000, scoped, tag = 'output window, operand 0, single buffered']
    #allocation3 [shape = 's32[1]{0}', space=sflag, size = 0x4, scoped, tag = 'scoped memory for tpu_custom_call.1']
    %15 = vsyncpa [#allocation3], 0
    // Predicated region
    $region2: #{tpu_custom_call.1} parent=1 // pred_check
      _
    $region3: #{tpu_custom_call.1} parent=1 // pred_check_branch
      %17 = sbr.rel (0) target = $region5
    $region4: #{tpu_custom_call.1} parent=1 // pred_region
      _
    $region5: #{tpu_custom_call.1} parent=1 // pred_fallthru
      _
    // Predicated region
    $region6: #{tpu_custom_call.1} parent=1 // pred_check
      _
    $region7: #{tpu_custom_call.1} parent=1 // pred_check_branch
      %19 = sbr.rel (0) target = $region9
    $region8: #{tpu_custom_call.1} parent=1 // pred_region
      _
    $region9: #{tpu_custom_call.1} parent=1 // pred_fallthru
      _
    // Predicated region
    $region10: #{tpu_custom_call.1} parent=1 // pred_check
      _
    $region11: #{tpu_custom_call.1} parent=1 // pred_check_branch
      %21 = sbr.rel (0) target = $region13
    $region12: #{tpu_custom_call.1} parent=1 // pred_region
      _
    $region13: #{tpu_custom_call.1} parent=1 // pred_fallthru
      _
    // Predicated region
    $region14: #{tpu_custom_call.1} parent=1 // pred_check
      _
    $region15: #{tpu_custom_call.1} parent=1 // pred_check_branch
      %23 = sbr.rel (0) target = $region17
    $region16: #{tpu_custom_call.1} parent=1 // pred_region
      _
    $region17: #{tpu_custom_call.1} parent=1 // pred_fallthru
      _
    // Predicated region
    $region18: #{tpu_custom_call.1} parent=1 // pred_check
      _
    $region19: #{tpu_custom_call.1} parent=1 // pred_check_branch
      %25 = sbr.rel (0) target = $region21
    $region20: #{tpu_custom_call.1} parent=1 // pred_region
      _
    $region21: #{tpu_custom_call.1} parent=1 // pred_fallthru
      _
    // Predicated region
    $region22: #{tpu_custom_call.1} parent=1 // pred_check
      _
    $region23: #{tpu_custom_call.1} parent=1 // pred_check_branch
      %27 = sbr.rel (0) target = $region25
    $region24: #{tpu_custom_call.1} parent=1 // pred_region
      _
    $region25: #{tpu_custom_call.1} parent=1 // pred_fallthru
      _
    // Predicated region
    $region26: #{tpu_custom_call.1} parent=1 // pred_check
      _
    $region27: #{tpu_custom_call.1} parent=1 // pred_check_branch
      %29 = sbr.rel (0) target = $region29
    $region28: #{tpu_custom_call.1} parent=1 // pred_region
      _
    $region29: #{tpu_custom_call.1} parent=1 // pred_fallthru
      _
    // Predicated region
    $region30: #{tpu_custom_call.1} parent=1 // pred_check
      _
    $region31: #{tpu_custom_call.1} parent=1 // pred_check_branch
      %31 = sbr.rel (0) target = $region33
    $region32: #{tpu_custom_call.1} parent=1 // pred_region
      _
    $region33: #{tpu_custom_call.1} parent=1 // pred_fallthru
      _
    // Predicated region
    $region34: #{tpu_custom_call.1} parent=1 // pred_check
      _
    $region35: #{tpu_custom_call.1} parent=1 // pred_check_branch
      %33 = sbr.rel (0) target = $region37
    $region36: #{tpu_custom_call.1} parent=1 // pred_region
      _
    $region37: #{tpu_custom_call.1} parent=1 // pred_fallthru
      _
    // Predicated region
    $region38: #{tpu_custom_call.1} parent=1 // pred_check
      _
    $region39: #{tpu_custom_call.1} parent=1 // pred_check_branch
      %35 = sbr.rel (0) target = $region41
    $region40: #{tpu_custom_call.1} parent=1 // pred_region
      _
    $region41: #{tpu_custom_call.1} parent=1 // pred_fallthru
      _
    %v36 = vld [vmem:[%s0] sm:$0xff]
    %v37 = vld [vmem:[%s0 + $0x8] sm:$0xff]
    %v38 = vld [vmem:[%s0 + $0x10] sm:$0x3]
    %v39 = vld [vmem:[%s7] sm:$0xff]
    %v40 = vld [vmem:[%s7 + $0x8] sm:$0xff]
    %v41 = vld [vmem:[%s7 + $0x10] sm:$0x3]
    %v42 = vld [vmem:[%s1] sm:$0xff]
    %v43 = vld [vmem:[%s1 + $0x8] sm:$0xff]
    %v44 = vld [vmem:[%s4] sm:$0x1]
    %v46 = vlaneseq
    %v47 = vshrl.u32 %v46, 7
    %v48 = vsub.s32 0, %v47
    %v49 = vrot.slane %v44, %v48
    %vm51 = vcmask 130048
    %v53 = vsel %vm51, %v36, 0
    %v56 = vsel %vm51, %v37, 0
    %v59 = vsel %vm51, %v38, 0
    %61 = vmatprep.subr.mxu0 0.0
    %62 = vmatpush1.msra.mxu0 %v42
    %63 = vmatprep.subr.mxu0 0.0
    %64 = vmatpush1.msra.mxu0 %v43
    %65 = vmatprep.subr.mxu0 0.0
    %66 = vmatpush1.msra.mxu0 0.0
    %67 = vmatprep.subr.mxu0 0.0
    %68 = vmatpush1.msra.mxu0 0.0
    %69 = vmatprep.subr.mxu0 0.0
    %70 = vmatpush1.msra.mxu0 0.0
    %71 = vmatprep.subr.mxu0 0.0
    %72 = vmatpush1.msra.mxu0 0.0
    %73 = vmatprep.subr.mxu0 0.0
    %74 = vmatpush1.msra.mxu0 0.0
    %75 = vmatprep.subr.mxu0 0.0
    %76 = vmatpush1.msra.mxu0 0.0
    %77 = vmatprep.subr.mxu0 0.0
    %78 = vmatpush1.msra.mxu0 0.0
    %79 = vmatprep.subr.mxu0 0.0
    %80 = vmatpush1.msra.mxu0 0.0
    %81 = vmatprep.subr.mxu0 0.0
    %82 = vmatpush1.msra.mxu0 0.0
    %83 = vmatprep.subr.mxu0 0.0
    %84 = vmatpush1.msra.mxu0 0.0
    %85 = vmatprep.subr.mxu0 0.0
    %86 = vmatpush1.msra.mxu0 0.0
    %87 = vmatprep.subr.mxu0 0.0
    %88 = vmatpush1.msra.mxu0 0.0
    %89 = vmatprep.subr.mxu0 0.0
    %90 = vmatpush1.msra.mxu0 0.0
    %91 = vmatprep.subr.mxu0 0.0
    %92 = vmatpush1.msra.mxu0 0.0
    %93 = vmatprep.subr.mxu0 0.0
    %94 = vmatpush1.msra.mxu0 0.0
    %95 = vmatprep.subr.mxu0 0.0
    %96 = vmatpush1.msra.mxu0 0.0
    %97 = vmatprep.subr.mxu0 0.0
    %98 = vmatpush1.msra.mxu0 0.0
    %99 = vmatprep.subr.mxu0 0.0
    %100 = vmatpush1.msra.mxu0 0.0
    %101 = vmatprep.subr.mxu0 0.0
    %102 = vmatpush1.msra.mxu0 0.0
    %103 = vmatprep.subr.mxu0 0.0
    %104 = vmatpush1.msra.mxu0 0.0
    %105 = vmatprep.subr.mxu0 0.0
    %106 = vmatpush1.msra.mxu0 0.0
    %107 = vmatprep.subr.mxu0 0.0
    %108 = vmatpush1.msra.mxu0 0.0
    %109 = vmatprep.subr.mxu0 0.0
    %110 = vmatpush1.msra.mxu0 0.0
    %111 = vmatprep.subr.mxu0 0.0
    %112 = vmatpush1.msra.mxu0 0.0
    %113 = vmatprep.subr.mxu0 0.0
    %114 = vmatpush1.msra.mxu0 0.0
    %115 = vmatprep.subr.mxu0 0.0
    %116 = vmatpush1.msra.mxu0 0.0
    %117 = vmatprep.subr.mxu0 0.0
    %118 = vmatpush1.msra.mxu0 0.0
    %119 = vmatprep.subr.mxu0 0.0
    %120 = vmatpush1.msra.mxu0 0.0
    %121 = vmatprep.subr.mxu0 0.0
    %122 = vmatpush1.msra.mxu0 0.0
    %123 = vmatprep.subr.mxu0 0.0
    %124 = vmatpush1.msra.mxu0 0.0
    %125 = vmatprep.mubr.f32.mxu0 0.0
    %126 = vmatmul.mubr.f32.gmra.mrb[0].mxu0 %v53
    %v127 = vpop.f32.mrb[0].mxu0
    %v128 = vadd.f32 %v49, %v127
    %v129 = vpop.f32.mrb[0].mxu0
    %130 = vmatprep.mubr.f32.mxu0 0.0
    %131 = vmatmul.mubr.f32.gmra.mrb[0].mxu0 %v56
    %v132 = vpop.f32.mrb[0].mxu0
    %v133 = vadd.f32 %v49, %v132
    %v134 = vpop.f32.mrb[0].mxu0
    %135 = vmatprep.mubr.f32.mxu0 0.0
    %136 = vmatmul.mubr.f32.gmra.mrb[0].mxu0 %v59
    %v137 = vpop.f32.mrb[0].mxu0
    %v138 = vadd.f32 %v49, %v137
    %v139 = vpop.f32.mrb[0].mxu0
    %140 = vdwg.mxu0
    %vm141 = vcmask 261120
    %v142 = vsel %vm141, %v128, 0.0
    %143 = vadd.xlane.f32.xlu0 %v142
    %v144 = vpop.xlane.xlu0 %143
    %v145 = vsel %vm141, %v133, 0.0
    %146 = vadd.xlane.f32.xlu0 %v145
    %v147 = vpop.xlane.xlu0 %146
    %vm148 = vcmask 254976
    %v149 = vsel %vm148, %v138, 0.0
    %150 = vadd.xlane.f32.xlu0 %v149
    %v151 = vpop.xlane.xlu0 %150
    %v152 = vmul.f32 %v128, %v128
    %v153 = vmul.f32 %v133, %v133
    %v154 = vmul.f32 %v138, %v138
    %v155 = vsel %vm141, %v152, 0.0
    %156 = vadd.xlane.f32.xlu0 %v155
    %v157 = vpop.xlane.xlu0 %156
    %v158 = vsel %vm141, %v153, 0.0
    %159 = vadd.xlane.f32.xlu0 %v158
    %v160 = vpop.xlane.xlu0 %159
    %v161 = vsel %vm148, %v154, 0.0
    %162 = vadd.xlane.f32.xlu0 %v161
    %v163 = vpop.xlane.xlu0 %162
    %vm164 = vcmask 146432
    %v166 = vsel %vm164, %v39, 0
    %v169 = vsel %vm164, %v40, 0
    %v172 = vsel %vm164, %v41, 0
    %vm174 = vcmask 1041408
    %v176 = vsel %vm174, %v151, 0
    %178 = vmatprep.subr.mxu0 0.0
    %179 = vmatpush1.msra.mxu0 %v144
    %180 = vmatprep.subr.mxu0 0.0
    %181 = vmatpush1.msra.mxu0 %v147
    %182 = vmatprep.subr.mxu0 0.0
    %183 = vmatpush1.msra.mxu0 %v176
    %184 = vmatprep.subr.mxu0 0.0
    %185 = vmatpush1.msra.mxu0 0.0
    %186 = vmatprep.subr.mxu0 0.0
    %187 = vmatpush1.msra.mxu0 0.0
    %188 = vmatprep.subr.mxu0 0.0
    %189 = vmatpush1.msra.mxu0 0.0
    %190 = vmatprep.subr.mxu0 0.0
    %191 = vmatpush1.msra.mxu0 0.0
    %192 = vmatprep.subr.mxu0 0.0
    %193 = vmatpush1.msra.mxu0 0.0
    %194 = vmatprep.subr.mxu0 0.0
    %195 = vmatpush1.msra.mxu0 0.0
    %196 = vmatprep.subr.mxu0 0.0
    %197 = vmatpush1.msra.mxu0 0.0
    %198 = vmatprep.subr.mxu0 0.0
    %199 = vmatpush1.msra.mxu0 0.0
    %200 = vmatprep.subr.mxu0 0.0
    %201 = vmatpush1.msra.mxu0 0.0
    %202 = vmatprep.subr.mxu0 0.0
    %203 = vmatpush1.msra.mxu0 0.0
    %204 = vmatprep.subr.mxu0 0.0
    %205 = vmatpush1.msra.mxu0 0.0
    %206 = vmatprep.subr.mxu0 0.0
    %207 = vmatpush1.msra.mxu0 0.0
    %208 = vmatprep.subr.mxu0 0.0
    %209 = vmatpush1.msra.mxu0 0.0
    %210 = vmatprep.subr.mxu0 0.0
    %211 = vmatpush1.msra.mxu0 0.0
    %212 = vmatprep.subr.mxu0 0.0
    %213 = vmatpush1.msra.mxu0 0.0
    %214 = vmatprep.subr.mxu0 0.0
    %215 = vmatpush1.msra.mxu0 0.0
    %216 = vmatprep.subr.mxu0 0.0
    %217 = vmatpush1.msra.mxu0 0.0
    %218 = vmatprep.subr.mxu0 0.0
    %219 = vmatpush1.msra.mxu0 0.0
    %220 = vmatprep.subr.mxu0 0.0
    %221 = vmatpush1.msra.mxu0 0.0
    %222 = vmatprep.subr.mxu0 0.0
    %223 = vmatpush1.msra.mxu0 0.0
    %224 = vmatprep.subr.mxu0 0.0
    %225 = vmatpush1.msra.mxu0 0.0
    %226 = vmatprep.subr.mxu0 0.0
    %227 = vmatpush1.msra.mxu0 0.0
    %228 = vmatprep.subr.mxu0 0.0
    %229 = vmatpush1.msra.mxu0 0.0
    %230 = vmatprep.subr.mxu0 0.0
    %231 = vmatpush1.msra.mxu0 0.0
    %232 = vmatprep.subr.mxu0 0.0
    %233 = vmatpush1.msra.mxu0 0.0
    %234 = vmatprep.subr.mxu0 0.0
    %235 = vmatpush1.msra.mxu0 0.0
    %236 = vmatprep.subr.mxu0 0.0
    %237 = vmatpush1.msra.mxu0 0.0
    %238 = vmatprep.subr.mxu0 0.0
    %239 = vmatpush1.msra.mxu0 0.0
    %240 = vmatprep.subr.mxu0 0.0
    %241 = vmatpush1.msra.mxu0 0.0
    %242 = vmatprep.mubr.f32.mxu0 0.0
    %243 = vmatmul.mubr.f32.gmra.mrb[0].mxu0 %v166
    %v244 = vpop.f32.mrb[0].mxu0
    %v245 = vadd.f32 0.0, %v244
    %v246 = vpop.f32.mrb[0].mxu0
    %247 = vmatprep.mubr.f32.mxu0 0.0
    %248 = vmatmul.mubr.f32.gmra.mrb[0].mxu0 %v169
    %v249 = vpop.f32.mrb[0].mxu0
    %v250 = vadd.f32 0.0, %v249
    %v251 = vpop.f32.mrb[0].mxu0
    %252 = vmatprep.mubr.f32.mxu0 0.0
    %253 = vmatmul.mubr.f32.gmra.mrb[0].mxu0 %v172
    %v254 = vpop.f32.mrb[0].mxu0
    %v255 = vadd.f32 0.0, %v254
    %v256 = vpop.f32.mrb[0].mxu0
    %257 = vdwg.mxu0
    %v258 = vmul.f32 %v245, 0.015625
    %v259 = vmul.f32 %v250, 0.015625
    %v260 = vmul.f32 %v255, 0.015625
    %v262 = vsel %vm174, %v163, 0
    %264 = vmatprep.subr.mxu0 0.0
    %265 = vmatpush1.msra.mxu0 %v157
    %266 = vmatprep.subr.mxu0 0.0
    %267 = vmatpush1.msra.mxu0 %v160
    %268 = vmatprep.subr.mxu0 0.0
    %269 = vmatpush1.msra.mxu0 %v262
    %270 = vmatprep.subr.mxu0 0.0
    %271 = vmatpush1.msra.mxu0 0.0
    %272 = vmatprep.subr.mxu0 0.0
    %273 = vmatpush1.msra.mxu0 0.0
    %274 = vmatprep.subr.mxu0 0.0
    %275 = vmatpush1.msra.mxu0 0.0
    %276 = vmatprep.subr.mxu0 0.0
    %277 = vmatpush1.msra.mxu0 0.0
    %278 = vmatprep.subr.mxu0 0.0
    %279 = vmatpush1.msra.mxu0 0.0
    %280 = vmatprep.subr.mxu0 0.0
    %281 = vmatpush1.msra.mxu0 0.0
    %282 = vmatprep.subr.mxu0 0.0
    %283 = vmatpush1.msra.mxu0 0.0
    %284 = vmatprep.subr.mxu0 0.0
    %285 = vmatpush1.msra.mxu0 0.0
    %286 = vmatprep.subr.mxu0 0.0
    %287 = vmatpush1.msra.mxu0 0.0
    %288 = vmatprep.subr.mxu0 0.0
    %289 = vmatpush1.msra.mxu0 0.0
    %290 = vmatprep.subr.mxu0 0.0
    %291 = vmatpush1.msra.mxu0 0.0
    %292 = vmatprep.subr.mxu0 0.0
    %293 = vmatpush1.msra.mxu0 0.0
    %294 = vmatprep.subr.mxu0 0.0
    %295 = vmatpush1.msra.mxu0 0.0
    %296 = vmatprep.subr.mxu0 0.0
    %297 = vmatpush1.msra.mxu0 0.0
    %298 = vmatprep.subr.mxu0 0.0
    %299 = vmatpush1.msra.mxu0 0.0
    %300 = vmatprep.subr.mxu0 0.0
    %301 = vmatpush1.msra.mxu0 0.0
    %302 = vmatprep.subr.mxu0 0.0
    %303 = vmatpush1.msra.mxu0 0.0
    %304 = vmatprep.subr.mxu0 0.0
    %305 = vmatpush1.msra.mxu0 0.0
    %306 = vmatprep.subr.mxu0 0.0
    %307 = vmatpush1.msra.mxu0 0.0
    %308 = vmatprep.subr.mxu0 0.0
    %309 = vmatpush1.msra.mxu0 0.0
    %310 = vmatprep.subr.mxu0 0.0
    %311 = vmatpush1.msra.mxu0 0.0
    %312 = vmatprep.subr.mxu0 0.0
    %313 = vmatpush1.msra.mxu0 0.0
    %314 = vmatprep.subr.mxu0 0.0
    %315 = vmatpush1.msra.mxu0 0.0
    %316 = vmatprep.subr.mxu0 0.0
    %317 = vmatpush1.msra.mxu0 0.0
    %318 = vmatprep.subr.mxu0 0.0
    %319 = vmatpush1.msra.mxu0 0.0
    %320 = vmatprep.subr.mxu0 0.0
    %321 = vmatpush1.msra.mxu0 0.0
    %322 = vmatprep.subr.mxu0 0.0
    %323 = vmatpush1.msra.mxu0 0.0
    %324 = vmatprep.subr.mxu0 0.0
    %325 = vmatpush1.msra.mxu0 0.0
    %326 = vmatprep.subr.mxu0 0.0
    %327 = vmatpush1.msra.mxu0 0.0
    %328 = vmatprep.mubr.f32.mxu0 0.0
    %329 = vmatmul.mubr.f32.gmra.mrb[0].mxu0 %v166
    %v330 = vpop.f32.mrb[0].mxu0
    %v331 = vadd.f32 0.0, %v330
    %v332 = vpop.f32.mrb[0].mxu0
    %333 = vmatprep.mubr.f32.mxu0 0.0
    %334 = vmatmul.mubr.f32.gmra.mrb[0].mxu0 %v169
    %v335 = vpop.f32.mrb[0].mxu0
    %v336 = vadd.f32 0.0, %v335
    %v337 = vpop.f32.mrb[0].mxu0
    %338 = vmatprep.mubr.f32.mxu0 0.0
    %339 = vmatmul.mubr.f32.gmra.mrb[0].mxu0 %v172
    %v340 = vpop.f32.mrb[0].mxu0
    %v341 = vadd.f32 0.0, %v340
    %v342 = vpop.f32.mrb[0].mxu0
    %343 = vdwg.mxu0
    %v344 = vmul.f32 %v331, 0.015625
    %v345 = vmul.f32 %v336, 0.015625
    %v346 = vmul.f32 %v341, 0.015625
    %v347 = vmul.f32 %v258, %v258
    %v348 = vmul.f32 %v259, %v259
    %v349 = vmul.f32 %v260, %v260
    %v350 = vsub.f32 %v344, %v347
    %v351 = vsub.f32 %v345, %v348
    %v352 = vsub.f32 %v346, %v349
    %v353 = vmax.f32 %v350, 0.0
    %v354 = vmax.f32 %v351, 0.0
    %v355 = vmax.f32 %v352, 0.0
    %v356 = vadd.f32 %v353, 1e-05
    %v357 = vadd.f32 %v354, 1e-05
    %v358 = vadd.f32 %v355, 1e-05
    %v359 = vrsqrt.pop %v356
    %v360 = vrsqrt.pop %v357
    %v361 = vrsqrt.pop %v358
    %v362 = vld [vmem:[%s8] sm:$0xff]
    %v363 = vld [vmem:[%s8 + $0x8] sm:$0xff]
    %v364 = vld [vmem:[%s8 + $0x10] sm:$0x3]
    %v365 = vmul.f32 %v359, %v362
    %v366 = vmul.f32 %v360, %v363
    %v367 = vmul.f32 %v361, %v364
    %v368 = vld [vmem:[%s9] sm:$0xff]
    %v369 = vld [vmem:[%s9 + $0x8] sm:$0xff]
    %v370 = vld [vmem:[%s9 + $0x10] sm:$0x3]
    %v371 = vmul.f32 %v258, %v365
    %v372 = vmul.f32 %v259, %v366
    %v373 = vmul.f32 %v260, %v367
    %v374 = vsub.f32 %v368, %v371
    %v375 = vsub.f32 %v369, %v372
    %v376 = vsub.f32 %v370, %v373
    %378 = vset.pattern.permute.xlu0 0
    %379 = vperm.xlu0 %378, %v365
    %v380 = vpop.permute.xlu0 %379
    %383 = vset.pattern.permute.xlu0 0
    %384 = vperm.xlu0 %383, %v366
    %v385 = vpop.permute.xlu0 %384
    %388 = vset.pattern.permute.xlu0 0
    %389 = vperm.xlu0 %388, %v367
    %v390 = vpop.permute.xlu0 %389
    %v392 = vmul.f32 %v128, %v380
    %v393 = vmul.f32 %v133, %v385
    %v394 = vmul.f32 %v138, %v390
    %396 = vset.pattern.permute.xlu0 0
    %397 = vperm.xlu0 %396, %v374
    %v398 = vpop.permute.xlu0 %397
    %401 = vset.pattern.permute.xlu0 0
    %402 = vperm.xlu0 %401, %v375
    %v403 = vpop.permute.xlu0 %402
    %406 = vset.pattern.permute.xlu0 0
    %407 = vperm.xlu0 %406, %v376
    %v408 = vpop.permute.xlu0 %407
    %v410 = vadd.f32 %v392, %v398
    %v411 = vadd.f32 %v393, %v403
    %v412 = vadd.f32 %v394, %v408
    %v413 = vmax.f32 %v410, 0.0
    %v414 = vmax.f32 %v411, 0.0
    %v415 = vmax.f32 %v412, 0.0
    %v416 = vld [vmem:[%s2] sm:$0xff]
    %v417 = vld [vmem:[%s2 + $0x8] sm:$0xff]
    %v418 = vld [vmem:[%s2 + $0x10] sm:$0xff]
    %v419 = vld [vmem:[%s2 + $0x18] sm:$0xff]
    %v420 = vld [vmem:[%s5] sm:$0x1]
    %v422 = vlaneseq
    %v423 = vshrl.u32 %v422, 7
    %v424 = vsub.s32 0, %v423
    %v425 = vrot.slane %v420, %v424
    %v428 = vsel %vm141, %v413, 0
    %v431 = vsel %vm141, %v414, 0
    %v434 = vsel %vm141, %v415, 0
    %436 = vmatprep.subr.mxu0 0.0
    %437 = vmatpush1.msra.mxu0 %v416
    %438 = vmatprep.subr.mxu0 0.0
    %439 = vmatpush1.msra.mxu0 %v417
    %440 = vmatprep.subr.mxu0 0.0
    %441 = vmatpush1.msra.mxu0 %v418
    %442 = vmatprep.subr.mxu0 0.0
    %443 = vmatpush1.msra.mxu0 %v419
    %444 = vmatprep.subr.mxu0 0.0
    %445 = vmatpush1.msra.mxu0 0.0
    %446 = vmatprep.subr.mxu0 0.0
    %447 = vmatpush1.msra.mxu0 0.0
    %448 = vmatprep.subr.mxu0 0.0
    %449 = vmatpush1.msra.mxu0 0.0
    %450 = vmatprep.subr.mxu0 0.0
    %451 = vmatpush1.msra.mxu0 0.0
    %452 = vmatprep.subr.mxu0 0.0
    %453 = vmatpush1.msra.mxu0 0.0
    %454 = vmatprep.subr.mxu0 0.0
    %455 = vmatpush1.msra.mxu0 0.0
    %456 = vmatprep.subr.mxu0 0.0
    %457 = vmatpush1.msra.mxu0 0.0
    %458 = vmatprep.subr.mxu0 0.0
    %459 = vmatpush1.msra.mxu0 0.0
    %460 = vmatprep.subr.mxu0 0.0
    %461 = vmatpush1.msra.mxu0 0.0
    %462 = vmatprep.subr.mxu0 0.0
    %463 = vmatpush1.msra.mxu0 0.0
    %464 = vmatprep.subr.mxu0 0.0
    %465 = vmatpush1.msra.mxu0 0.0
    %466 = vmatprep.subr.mxu0 0.0
    %467 = vmatpush1.msra.mxu0 0.0
    %468 = vmatprep.subr.mxu0 0.0
    %469 = vmatpush1.msra.mxu0 0.0
    %470 = vmatprep.subr.mxu0 0.0
    %471 = vmatpush1.msra.mxu0 0.0
    %472 = vmatprep.subr.mxu0 0.0
    %473 = vmatpush1.msra.mxu0 0.0
    %474 = vmatprep.subr.mxu0 0.0
    %475 = vmatpush1.msra.mxu0 0.0
    %476 = vmatprep.subr.mxu0 0.0
    %477 = vmatpush1.msra.mxu0 0.0
    %478 = vmatprep.subr.mxu0 0.0
    %479 = vmatpush1.msra.mxu0 0.0
    %480 = vmatprep.subr.mxu0 0.0
    %481 = vmatpush1.msra.mxu0 0.0
    %482 = vmatprep.subr.mxu0 0.0
    %483 = vmatpush1.msra.mxu0 0.0
    %484 = vmatprep.subr.mxu0 0.0
    %485 = vmatpush1.msra.mxu0 0.0
    %486 = vmatprep.subr.mxu0 0.0
    %487 = vmatpush1.msra.mxu0 0.0
    %488 = vmatprep.subr.mxu0 0.0
    %489 = vmatpush1.msra.mxu0 0.0
    %490 = vmatprep.subr.mxu0 0.0
    %491 = vmatpush1.msra.mxu0 0.0
    %492 = vmatprep.subr.mxu0 0.0
    %493 = vmatpush1.msra.mxu0 0.0
    %494 = vmatprep.subr.mxu0 0.0
    %495 = vmatpush1.msra.mxu0 0.0
    %496 = vmatprep.subr.mxu0 0.0
    %497 = vmatpush1.msra.mxu0 0.0
    %498 = vmatprep.subr.mxu0 0.0
    %499 = vmatpush1.msra.mxu0 0.0
    %500 = vmatprep.mubr.f32.mxu0 0.0
    %501 = vmatmul.mubr.f32.gmra.mrb[0].mxu0 %v428
    %v502 = vpop.f32.mrb[0].mxu0
    %v503 = vadd.f32 %v425, %v502
    %v504 = vpop.f32.mrb[0].mxu0
    %505 = vmatprep.mubr.f32.mxu0 0.0
    %506 = vmatmul.mubr.f32.gmra.mrb[0].mxu0 %v431
    %v507 = vpop.f32.mrb[0].mxu0
    %v508 = vadd.f32 %v425, %v507
    %v509 = vpop.f32.mrb[0].mxu0
    %510 = vmatprep.mubr.f32.mxu0 0.0
    %511 = vmatmul.mubr.f32.gmra.mrb[0].mxu0 %v434
    %v512 = vpop.f32.mrb[0].mxu0
    %v513 = vadd.f32 %v425, %v512
    %v514 = vpop.f32.mrb[0].mxu0
    %515 = vdwg.mxu0
    %v516 = vsel %vm141, %v503, 0.0
    %517 = vadd.xlane.f32.xlu0 %v516
    %v518 = vpop.xlane.xlu0 %517
    %v519 = vsel %vm141, %v508, 0.0
    %520 = vadd.xlane.f32.xlu0 %v519
    %v521 = vpop.xlane.xlu0 %520
    %v522 = vsel %vm148, %v513, 0.0
    %523 = vadd.xlane.f32.xlu0 %v522
    %v524 = vpop.xlane.xlu0 %523
    %v525 = vmul.f32 %v503, %v503
    %v526 = vmul.f32 %v508, %v508
    %v527 = vmul.f32 %v513, %v513
    %v528 = vsel %vm141, %v525, 0.0
    %529 = vadd.xlane.f32.xlu0 %v528
    %v530 = vpop.xlane.xlu0 %529
    %v531 = vsel %vm141, %v526, 0.0
    %532 = vadd.xlane.f32.xlu0 %v531
    %v533 = vpop.xlane.xlu0 %532
    %v534 = vsel %vm148, %v527, 0.0
    %535 = vadd.xlane.f32.xlu0 %v534
    %v536 = vpop.xlane.xlu0 %535
    %v538 = vsel %vm174, %v524, 0
    %540 = vmatprep.subr.mxu0 0.0
    %541 = vmatpush1.msra.mxu0 %v518
    %542 = vmatprep.subr.mxu0 0.0
    %543 = vmatpush1.msra.mxu0 %v521
    %544 = vmatprep.subr.mxu0 0.0
    %545 = vmatpush1.msra.mxu0 %v538
    %546 = vmatprep.subr.mxu0 0.0
    %547 = vmatpush1.msra.mxu0 0.0
    %548 = vmatprep.subr.mxu0 0.0
    %549 = vmatpush1.msra.mxu0 0.0
    %550 = vmatprep.subr.mxu0 0.0
    %551 = vmatpush1.msra.mxu0 0.0
    %552 = vmatprep.subr.mxu0 0.0
    %553 = vmatpush1.msra.mxu0 0.0
    %554 = vmatprep.subr.mxu0 0.0
    %555 = vmatpush1.msra.mxu0 0.0
    %556 = vmatprep.subr.mxu0 0.0
    %557 = vmatpush1.msra.mxu0 0.0
    %558 = vmatprep.subr.mxu0 0.0
    %559 = vmatpush1.msra.mxu0 0.0
    %560 = vmatprep.subr.mxu0 0.0
    %561 = vmatpush1.msra.mxu0 0.0
    %562 = vmatprep.subr.mxu0 0.0
    %563 = vmatpush1.msra.mxu0 0.0
    %564 = vmatprep.subr.mxu0 0.0
    %565 = vmatpush1.msra.mxu0 0.0
    %566 = vmatprep.subr.mxu0 0.0
    %567 = vmatpush1.msra.mxu0 0.0
    %568 = vmatprep.subr.mxu0 0.0
    %569 = vmatpush1.msra.mxu0 0.0
    %570 = vmatprep.subr.mxu0 0.0
    %571 = vmatpush1.msra.mxu0 0.0
    %572 = vmatprep.subr.mxu0 0.0
    %573 = vmatpush1.msra.mxu0 0.0
    %574 = vmatprep.subr.mxu0 0.0
    %575 = vmatpush1.msra.mxu0 0.0
    %576 = vmatprep.subr.mxu0 0.0
    %577 = vmatpush1.msra.mxu0 0.0
    %578 = vmatprep.subr.mxu0 0.0
    %579 = vmatpush1.msra.mxu0 0.0
    %580 = vmatprep.subr.mxu0 0.0
    %581 = vmatpush1.msra.mxu0 0.0
    %582 = vmatprep.subr.mxu0 0.0
    %583 = vmatpush1.msra.mxu0 0.0
    %584 = vmatprep.subr.mxu0 0.0
    %585 = vmatpush1.msra.mxu0 0.0
    %586 = vmatprep.subr.mxu0 0.0
    %587 = vmatpush1.msra.mxu0 0.0
    %588 = vmatprep.subr.mxu0 0.0
    %589 = vmatpush1.msra.mxu0 0.0
    %590 = vmatprep.subr.mxu0 0.0
    %591 = vmatpush1.msra.mxu0 0.0
    %592 = vmatprep.subr.mxu0 0.0
    %593 = vmatpush1.msra.mxu0 0.0
    %594 = vmatprep.subr.mxu0 0.0
    %595 = vmatpush1.msra.mxu0 0.0
    %596 = vmatprep.subr.mxu0 0.0
    %597 = vmatpush1.msra.mxu0 0.0
    %598 = vmatprep.subr.mxu0 0.0
    %599 = vmatpush1.msra.mxu0 0.0
    %600 = vmatprep.subr.mxu0 0.0
    %601 = vmatpush1.msra.mxu0 0.0
    %602 = vmatprep.subr.mxu0 0.0
    %603 = vmatpush1.msra.mxu0 0.0
    %604 = vmatprep.mubr.f32.mxu0 0.0
    %605 = vmatmul.mubr.f32.gmra.mrb[0].mxu0 %v166
    %v606 = vpop.f32.mrb[0].mxu0
    %v607 = vadd.f32 0.0, %v606
    %v608 = vpop.f32.mrb[0].mxu0
    %609 = vmatprep.mubr.f32.mxu0 0.0
    %610 = vmatmul.mubr.f32.gmra.mrb[0].mxu0 %v169
    %v611 = vpop.f32.mrb[0].mxu0
    %v612 = vadd.f32 0.0, %v611
    %v613 = vpop.f32.mrb[0].mxu0
    %614 = vmatprep.mubr.f32.mxu0 0.0
    %615 = vmatmul.mubr.f32.gmra.mrb[0].mxu0 %v172
    %v616 = vpop.f32.mrb[0].mxu0
    %v617 = vadd.f32 0.0, %v616
    %v618 = vpop.f32.mrb[0].mxu0
    %619 = vdwg.mxu0
    %v620 = vmul.f32 %v607, 0.015625
    %v621 = vmul.f32 %v612, 0.015625
    %v622 = vmul.f32 %v617, 0.015625
    %v624 = vsel %vm174, %v536, 0
    %626 = vmatprep.subr.mxu0 0.0
    %627 = vmatpush1.msra.mxu0 %v530
    %628 = vmatprep.subr.mxu0 0.0
    %629 = vmatpush1.msra.mxu0 %v533
    %630 = vmatprep.subr.mxu0 0.0
    %631 = vmatpush1.msra.mxu0 %v624
    %632 = vmatprep.subr.mxu0 0.0
    %633 = vmatpush1.msra.mxu0 0.0
    %634 = vmatprep.subr.mxu0 0.0
    %635 = vmatpush1.msra.mxu0 0.0
    %636 = vmatprep.subr.mxu0 0.0
    %637 = vmatpush1.msra.mxu0 0.0
    %638 = vmatprep.subr.mxu0 0.0
    %639 = vmatpush1.msra.mxu0 0.0
    %640 = vmatprep.subr.mxu0 0.0
    %641 = vmatpush1.msra.mxu0 0.0
    %642 = vmatprep.subr.mxu0 0.0
    %643 = vmatpush1.msra.mxu0 0.0
    %644 = vmatprep.subr.mxu0 0.0
    %645 = vmatpush1.msra.mxu0 0.0
    %646 = vmatprep.subr.mxu0 0.0
    %647 = vmatpush1.msra.mxu0 0.0
    %648 = vmatprep.subr.mxu0 0.0
    %649 = vmatpush1.msra.mxu0 0.0
    %650 = vmatprep.subr.mxu0 0.0
    %651 = vmatpush1.msra.mxu0 0.0
    %652 = vmatprep.subr.mxu0 0.0
    %653 = vmatpush1.msra.mxu0 0.0
    %654 = vmatprep.subr.mxu0 0.0
    %655 = vmatpush1.msra.mxu0 0.0
    %656 = vmatprep.subr.mxu0 0.0
    %657 = vmatpush1.msra.mxu0 0.0
    %658 = vmatprep.subr.mxu0 0.0
    %659 = vmatpush1.msra.mxu0 0.0
    %660 = vmatprep.subr.mxu0 0.0
    %661 = vmatpush1.msra.mxu0 0.0
    %662 = vmatprep.subr.mxu0 0.0
    %663 = vmatpush1.msra.mxu0 0.0
    %664 = vmatprep.subr.mxu0 0.0
    %665 = vmatpush1.msra.mxu0 0.0
    %666 = vmatprep.subr.mxu0 0.0
    %667 = vmatpush1.msra.mxu0 0.0
    %668 = vmatprep.subr.mxu0 0.0
    %669 = vmatpush1.msra.mxu0 0.0
    %670 = vmatprep.subr.mxu0 0.0
    %671 = vmatpush1.msra.mxu0 0.0
    %672 = vmatprep.subr.mxu0 0.0
    %673 = vmatpush1.msra.mxu0 0.0
    %674 = vmatprep.subr.mxu0 0.0
    %675 = vmatpush1.msra.mxu0 0.0
    %676 = vmatprep.subr.mxu0 0.0
    %677 = vmatpush1.msra.mxu0 0.0
    %678 = vmatprep.subr.mxu0 0.0
    %679 = vmatpush1.msra.mxu0 0.0
    %680 = vmatprep.subr.mxu0 0.0
    %681 = vmatpush1.msra.mxu0 0.0
    %682 = vmatprep.subr.mxu0 0.0
    %683 = vmatpush1.msra.mxu0 0.0
    %684 = vmatprep.subr.mxu0 0.0
    %685 = vmatpush1.msra.mxu0 0.0
    %686 = vmatprep.subr.mxu0 0.0
    %687 = vmatpush1.msra.mxu0 0.0
    %688 = vmatprep.subr.mxu0 0.0
    %689 = vmatpush1.msra.mxu0 0.0
    %690 = vmatprep.mubr.f32.mxu0 0.0
    %691 = vmatmul.mubr.f32.gmra.mrb[0].mxu0 %v166
    %v692 = vpop.f32.mrb[0].mxu0
    %v693 = vadd.f32 0.0, %v692
    %v694 = vpop.f32.mrb[0].mxu0
    %695 = vmatprep.mubr.f32.mxu0 0.0
    %696 = vmatmul.mubr.f32.gmra.mrb[0].mxu0 %v169
    %v697 = vpop.f32.mrb[0].mxu0
    %v698 = vadd.f32 0.0, %v697
    %v699 = vpop.f32.mrb[0].mxu0
    %700 = vmatprep.mubr.f32.mxu0 0.0
    %701 = vmatmul.mubr.f32.gmra.mrb[0].mxu0 %v172
    %v702 = vpop.f32.mrb[0].mxu0
    %v703 = vadd.f32 0.0, %v702
    %v704 = vpop.f32.mrb[0].mxu0
    %705 = vdwg.mxu0
    %v706 = vmul.f32 %v693, 0.015625
    %v707 = vmul.f32 %v698, 0.015625
    %v708 = vmul.f32 %v703, 0.015625
    %v709 = vmul.f32 %v620, %v620
    %v710 = vmul.f32 %v621, %v621
    %v711 = vmul.f32 %v622, %v622
    %v712 = vsub.f32 %v706, %v709
    %v713 = vsub.f32 %v707, %v710
    %v714 = vsub.f32 %v708, %v711
    %v715 = vmax.f32 %v712, 0.0
    %v716 = vmax.f32 %v713, 0.0
    %v717 = vmax.f32 %v714, 0.0
    %v718 = vadd.f32 %v715, 1e-05
    %v719 = vadd.f32 %v716, 1e-05
    %v720 = vadd.f32 %v717, 1e-05
    %v721 = vrsqrt.pop %v718
    %v722 = vrsqrt.pop %v719
    %v723 = vrsqrt.pop %v720
    %s724 = scalar_lea.vmem %s8, 24
    %v725 = vld [vmem:[%s724] sm:$0xff]
    %v726 = vld [vmem:[%s724 + $0x8] sm:$0xff]
    %v727 = vld [vmem:[%s724 + $0x10] sm:$0x3]
    %v728 = vmul.f32 %v721, %v725
    %v729 = vmul.f32 %v722, %v726
    %v730 = vmul.f32 %v723, %v727
    %s731 = scalar_lea.vmem %s9, 24
    %v732 = vld [vmem:[%s731] sm:$0xff]
    %v733 = vld [vmem:[%s731 + $0x8] sm:$0xff]
    %v734 = vld [vmem:[%s731 + $0x10] sm:$0x3]
    %v735 = vmul.f32 %v620, %v728
    %v736 = vmul.f32 %v621, %v729
    %v737 = vmul.f32 %v622, %v730
    %v738 = vsub.f32 %v732, %v735
    %v739 = vsub.f32 %v733, %v736
    %v740 = vsub.f32 %v734, %v737
    %742 = vset.pattern.permute.xlu0 0
    %743 = vperm.xlu0 %742, %v728
    %v744 = vpop.permute.xlu0 %743
    %747 = vset.pattern.permute.xlu0 0
    %748 = vperm.xlu0 %747, %v729
    %v749 = vpop.permute.xlu0 %748
    %752 = vset.pattern.permute.xlu0 0
    %753 = vperm.xlu0 %752, %v730
    %v754 = vpop.permute.xlu0 %753
    %v756 = vmul.f32 %v503, %v744
    %v757 = vmul.f32 %v508, %v749
    %v758 = vmul.f32 %v513, %v754
    %760 = vset.pattern.permute.xlu0 0
    %761 = vperm.xlu0 %760, %v738
    %v762 = vpop.permute.xlu0 %761
    %765 = vset.pattern.permute.xlu0 0
    %766 = vperm.xlu0 %765, %v739
    %v767 = vpop.permute.xlu0 %766
    %770 = vset.pattern.permute.xlu0 0
    %771 = vperm.xlu0 %770, %v740
    %v772 = vpop.permute.xlu0 %771
    %v774 = vadd.f32 %v756, %v762
    %v775 = vadd.f32 %v757, %v767
    %v776 = vadd.f32 %v758, %v772
    %v777 = vmax.f32 %v774, 0.0
    %v778 = vmax.f32 %v775, 0.0
    %v779 = vmax.f32 %v776, 0.0
    %v780 = vld [vmem:[%s3] sm:$0xff]
    %v781 = vld [vmem:[%s3 + $0x8] sm:$0xff]
    %v782 = vld [vmem:[%s3 + $0x10] sm:$0xff]
    %v783 = vld [vmem:[%s3 + $0x18] sm:$0xff]
    %v784 = vld [vmem:[%s6] sm:$0x1]
    %v786 = vlaneseq
    %v787 = vshrl.u32 %v786, 7
    %v788 = vsub.s32 0, %v787
    %v789 = vrot.slane %v784, %v788
    %v792 = vsel %vm141, %v777, 0
    %v795 = vsel %vm141, %v778, 0
    %v798 = vsel %vm141, %v779, 0
    %800 = vmatprep.subr.mxu0 0.0
    %801 = vmatpush1.msra.mxu0 %v780
    %802 = vmatprep.subr.mxu0 0.0
    %803 = vmatpush1.msra.mxu0 %v781
    %804 = vmatprep.subr.mxu0 0.0
    %805 = vmatpush1.msra.mxu0 %v782
    %806 = vmatprep.subr.mxu0 0.0
    %807 = vmatpush1.msra.mxu0 %v783
    %808 = vmatprep.subr.mxu0 0.0
    %809 = vmatpush1.msra.mxu0 0.0
    %810 = vmatprep.subr.mxu0 0.0
    %811 = vmatpush1.msra.mxu0 0.0
    %812 = vmatprep.subr.mxu0 0.0
    %813 = vmatpush1.msra.mxu0 0.0
    %814 = vmatprep.subr.mxu0 0.0
    %815 = vmatpush1.msra.mxu0 0.0
    %816 = vmatprep.subr.mxu0 0.0
    %817 = vmatpush1.msra.mxu0 0.0
    %818 = vmatprep.subr.mxu0 0.0
    %819 = vmatpush1.msra.mxu0 0.0
    %820 = vmatprep.subr.mxu0 0.0
    %821 = vmatpush1.msra.mxu0 0.0
    %822 = vmatprep.subr.mxu0 0.0
    %823 = vmatpush1.msra.mxu0 0.0
    %824 = vmatprep.subr.mxu0 0.0
    %825 = vmatpush1.msra.mxu0 0.0
    %826 = vmatprep.subr.mxu0 0.0
    %827 = vmatpush1.msra.mxu0 0.0
    %828 = vmatprep.subr.mxu0 0.0
    %829 = vmatpush1.msra.mxu0 0.0
    %830 = vmatprep.subr.mxu0 0.0
    %831 = vmatpush1.msra.mxu0 0.0
    %832 = vmatprep.subr.mxu0 0.0
    %833 = vmatpush1.msra.mxu0 0.0
    %834 = vmatprep.subr.mxu0 0.0
    %835 = vmatpush1.msra.mxu0 0.0
    %836 = vmatprep.subr.mxu0 0.0
    %837 = vmatpush1.msra.mxu0 0.0
    %838 = vmatprep.subr.mxu0 0.0
    %839 = vmatpush1.msra.mxu0 0.0
    %840 = vmatprep.subr.mxu0 0.0
    %841 = vmatpush1.msra.mxu0 0.0
    %842 = vmatprep.subr.mxu0 0.0
    %843 = vmatpush1.msra.mxu0 0.0
    %844 = vmatprep.subr.mxu0 0.0
    %845 = vmatpush1.msra.mxu0 0.0
    %846 = vmatprep.subr.mxu0 0.0
    %847 = vmatpush1.msra.mxu0 0.0
    %848 = vmatprep.subr.mxu0 0.0
    %849 = vmatpush1.msra.mxu0 0.0
    %850 = vmatprep.subr.mxu0 0.0
    %851 = vmatpush1.msra.mxu0 0.0
    %852 = vmatprep.subr.mxu0 0.0
    %853 = vmatpush1.msra.mxu0 0.0
    %854 = vmatprep.subr.mxu0 0.0
    %855 = vmatpush1.msra.mxu0 0.0
    %856 = vmatprep.subr.mxu0 0.0
    %857 = vmatpush1.msra.mxu0 0.0
    %858 = vmatprep.subr.mxu0 0.0
    %859 = vmatpush1.msra.mxu0 0.0
    %860 = vmatprep.subr.mxu0 0.0
    %861 = vmatpush1.msra.mxu0 0.0
    %862 = vmatprep.subr.mxu0 0.0
    %863 = vmatpush1.msra.mxu0 0.0
    %864 = vmatprep.mubr.f32.mxu0 0.0
    %865 = vmatmul.mubr.f32.gmra.mrb[0].mxu0 %v792
    %v866 = vpop.f32.mrb[0].mxu0
    %v867 = vadd.f32 %v789, %v866
    %v868 = vpop.f32.mrb[0].mxu0
    %869 = vmatprep.mubr.f32.mxu0 0.0
    %870 = vmatmul.mubr.f32.gmra.mrb[0].mxu0 %v795
    %v871 = vpop.f32.mrb[0].mxu0
    %v872 = vadd.f32 %v789, %v871
    %v873 = vpop.f32.mrb[0].mxu0
    %874 = vmatprep.mubr.f32.mxu0 0.0
    %875 = vmatmul.mubr.f32.gmra.mrb[0].mxu0 %v798
    %v876 = vpop.f32.mrb[0].mxu0
    %v877 = vadd.f32 %v789, %v876
    %v878 = vpop.f32.mrb[0].mxu0
    %879 = vdwg.mxu0
    %880 = vst [vmem:[#allocation2] sm:$0xff] %v867
    %881 = vst [vmem:[#allocation2 + $0x8] sm:$0xff] %v872
    %882 = vst [vmem:[#allocation2 + $0x10] sm:$0x3] %v877
    // Predicated region
    $region42: #{tpu_custom_call.1} parent=1 // pred_check
      _
    $region43: #{tpu_custom_call.1} parent=1 // pred_check_branch
      %884 = sbr.rel (0) target = $region45
    $region44: #{tpu_custom_call.1} parent=1 // pred_region
      %s886 = ssub.s32 384, 384
      %887 = vsyncadd [#allocation3], %s886
      %s888 = sshll.u32 [#allocation2], 4
      %s889 = int_to_ptr.vmem [resolvable:$true] %s888
      %894 = dma.vmem_to_hbm [thread:$0]  %s889, 384, %s10, [#allocation3], 128, 128, 8
    $region45: #{tpu_custom_call.1} parent=1 // pred_fallthru
      _
    // Predicated region
    $region46: #{tpu_custom_call.1} parent=1 // pred_check
      _
    $region47: #{tpu_custom_call.1} parent=1 // pred_check_branch
      %896 = sbr.rel (0) target = $region49
    $region48: #{tpu_custom_call.1} parent=1 // pred_region
      %897 = dma.done [#allocation3], 384
    $region49: #{tpu_custom_call.1} parent=1 // pred_fallthru
      _
    %898 = vsyncpa [#allocation3], 1

</llo_original>
